<compile_context>
chip_gen: v7x
topology: tpu7x:2x2x1
jax: 0.10.0
libtpu: 0.0.40
codegen_flags: <defaults>
</compile_context>

<pallas_src>
import functools

import jax
import jax.numpy as jnp
from jax import lax
from jax.experimental import pallas as pl
from jax.experimental.pallas import tpu as pltpu

_MIB = 1 << 20


# ---------------------------------------------------------------------------
# Kernels
# ---------------------------------------------------------------------------

def _rows_kernel(x_ref, o_ref):
    """Whole-row block (tm, D); reduction over the lane axis.

    No full-tile f32 temporaries: the row max is computed on the native input
    dtype (a (tm, 1) value), and exp(x - m) is recomputed after the reduction
    so it streams per-vreg straight into the output pipeline buffer (EUP is
    ~5-10x faster than HBM here, so the extra exp is hidden).
    """
    m = jnp.maximum(
        jnp.max(x_ref[...], axis=-1, keepdims=True).astype(jnp.float32), 0.0)
    s = jnp.sum(jnp.exp(x_ref[...].astype(jnp.float32) - m),
                axis=-1, keepdims=True)
    # Per-row reciprocal (tm EUP ops) + broadcast multiply, not a per-element
    # divide.
    inv = pl.reciprocal(s + jnp.exp(-m), approx=False)
    o_ref[...] = (jnp.exp(x_ref[...].astype(jnp.float32) - m) * inv
                  ).astype(o_ref.dtype)


def _packed_kernel(x_ref, sel_ref, o_ref):
    """Lane-dense small-D block (tm, 128) holding 128//D logical rows per row.

    sel_ref is a (128, 128) block-diagonal 0/1 matrix; exp(x) @ sel gives the
    per-segment (per original row) sum already broadcast to every lane of its
    segment, so the whole segmented reduction is one small matmul on the
    otherwise-idle MXU.  exp(x) is split into an exactly-representable bf16
    "hi" part plus a small residual so the segmented sum stays accurate to
    ~1e-6 relative regardless of how the compiler maps the f32 matmul onto
    bf16 MXU passes.  Matches PyTorch exactly: exp(x) / (seg_sum + 1).
    """
    ex = jnp.exp(x_ref[...].astype(jnp.float32))
    ex_hi = ex.astype(jnp.bfloat16).astype(jnp.float32)
    ex_lo = ex - ex_hi
    sel = sel_ref[...]
    denom = (jnp.dot(ex_hi, sel, preferred_element_type=jnp.float32)
             + jnp.dot(ex_lo, sel, preferred_element_type=jnp.float32)
             + 1.0)
    o_ref[...] = (ex * pl.reciprocal(denom, approx=False)).astype(o_ref.dtype)


def _d_tiled_kernel(x_ref, o_ref, m_scr, s_scr, *, d_total):
    """Reduction-split path: grid = (row tiles, 2 passes, D tiles).

    Pass 0 accumulates online (max, sum) per row in (tm, 1) scratch; pass 1
    re-reads the row blocks and writes the normalized output.  Out-of-range
    lanes of the final partial D block are masked with -inf so they contribute
    exp(-inf) = 0 to the statistics.
    """
    p = pl.program_id(1)
    k = pl.program_id(2)
    td = x_ref.shape[-1]

    col = lax.broadcasted_iota(jnp.int32, x_ref.shape, 1) + k * td
    valid = col < d_total

    @pl.when(jnp.logical_and(p == 0, k == 0))
    def _():
        # Running max starts at 0 because the final shift is m = max(rowmax, 0).
        m_scr[...] = jnp.zeros_like(m_scr)
        s_scr[...] = jnp.zeros_like(s_scr)

    @pl.when(p == 0)
    def _():
        xb = jnp.where(valid, x_ref[...].astype(jnp.float32), -jnp.inf)
        m_old = m_scr[...]
        m_new = jnp.maximum(m_old, jnp.max(xb, axis=-1, keepdims=True))
        s_scr[...] = (s_scr[...] * jnp.exp(m_old - m_new)
                      + jnp.sum(jnp.exp(xb - m_new), axis=-1, keepdims=True))
        m_scr[...] = m_new

    @pl.when(p == 1)
    def _():
        m = m_scr[...]
        inv = pl.reciprocal(s_scr[...] + jnp.exp(-m), approx=False)
        val = jnp.exp(x_ref[...].astype(jnp.float32) - m) * inv
        o_ref[...] = jnp.where(valid, val, 0.0).astype(o_ref.dtype)


# ---------------------------------------------------------------------------
# Tile planning (bytes-based, generation-aware)
# ---------------------------------------------------------------------------

def _vmem_capacity_bytes() -> int:
    """Physical VMEM per TensorCore; conservative (v7x-sized) fallback."""
    try:
        cap = int(pltpu.get_tpu_info().vmem_capacity_bytes)
        if cap > 0:
            return cap
    except Exception:
        pass
    return 64 * _MIB


def _round_up(x: int, m: int) -> int:
    return ((x + m - 1) // m) * m


def _plan_row_tiles(n_rows: int, row_width: int, itemsize: int,
                    vmem_cap: int, f32_temps: int):
    """Pick (tm, vmem_limit_bytes) for a row-tiled launch.

    Footprint model per tile element: 2 input + 2 output pipeline buffers in
    the native dtype plus `f32_temps` full-tile f32 intermediates.  A 70%
    budget lands at ~12-16 MiB per pipeline buffer on 128 MiB-VMEM parts
    (v5e/v6e) and ~6-8 MiB on 64 MiB parts (v7x) for f32 -- past the measured
    HBM-roofline knee, with no arbitrary row cap.
    """
    per_elem = 4 * itemsize + 4 * f32_temps
    budget = int(0.70 * vmem_cap)
    two_core = vmem_cap <= 96 * _MIB   # v7x-like: 64 MiB VMEM, 2 TensorCores

    if n_rows <= 8:
        tm = max(n_rows, 1)
    else:
        tm_vmem = max((budget // per_elem) // max(row_width, 1), 8)
        # >=2 programs on single-TC chips (pipeline overlap), >=4 on 2-TC
        # chips (both cores + double buffering); never shrink below 8 rows.
        min_programs = 4 if two_core else 2
        tm_par = max(pl.cdiv(n_rows, min_programs), 8)
        tm = min(tm_vmem, tm_par, (n_rows // 8) * 8)
        tm = max((tm // 8) * 8, 8)
        if two_core:
            # Prefer an even program count so neither TensorCore idles.
            n_prog = pl.cdiv(n_rows, tm)
            if n_prog > 1 and n_prog % 2 == 1:
                tm_even = min(max(_round_up(pl.cdiv(n_rows, n_prog + 1), 8), 8), tm)
                if pl.cdiv(n_rows, tm_even) % 2 == 0:
                    tm = tm_even

    footprint = tm * row_width * per_elem + 2 * _MIB
    vmem_limit = int(min(max(32 * _MIB, footprint), int(0.85 * vmem_cap)))
    return tm, vmem_limit


# ---------------------------------------------------------------------------
# pallas_call wrappers
# ---------------------------------------------------------------------------

def _hyper_softmax_rows(x2, tm, vmem_limit):
    r, d = x2.shape
    return pl.pallas_call(
        _rows_kernel,
        out_shape=jax.ShapeDtypeStruct((r, d), x2.dtype),
        grid_spec=pltpu.PrefetchScalarGridSpec(
            num_scalar_prefetch=0,
            grid=(pl.cdiv(r, tm),),
            in_specs=[pl.BlockSpec((tm, d), lambda i: (i, 0))],
            out_specs=pl.BlockSpec((tm, d), lambda i: (i, 0)),
        ),
        compiler_params=pltpu.CompilerParams(
            dimension_semantics=("parallel",),
            vmem_limit_bytes=vmem_limit,
        ),
    )(x2)


def _hyper_softmax_packed(x2, seg, tm, vmem_limit):
    # x2: (R // g, 128) with g = 128 // seg logical rows packed per lane row.
    r, lanes = x2.shape
    idx = jnp.arange(lanes)
    sel = (idx[:, None] // seg == idx[None, :] // seg).astype(jnp.float32)
    return pl.pallas_call(
        _packed_kernel,
        out_shape=jax.ShapeDtypeStruct((r, lanes), x2.dtype),
        grid_spec=pltpu.PrefetchScalarGridSpec(
            num_scalar_prefetch=0,
            grid=(pl.cdiv(r, tm),),
            in_specs=[
                pl.BlockSpec((tm, lanes), lambda i: (i, 0)),
                pl.BlockSpec((lanes, lanes), lambda i: (0, 0)),  # stays resident
            ],
            out_specs=pl.BlockSpec((tm, lanes), lambda i: (i, 0)),
        ),
        compiler_params=pltpu.CompilerParams(
            dimension_semantics=("parallel",),
            vmem_limit_bytes=vmem_limit,
        ),
    )(x2, sel)


def _hyper_softmax_d_tiled(x2, tm, td, vmem_limit):
    r, d = x2.shape
    kernel = functools.partial(_d_tiled_kernel, d_total=d)
    return pl.pallas_call(
        kernel,
        out_shape=jax.ShapeDtypeStruct((r, d), x2.dtype),
        grid_spec=pltpu.PrefetchScalarGridSpec(
            num_scalar_prefetch=0,
            grid=(pl.cdiv(r, tm), 2, pl.cdiv(d, td)),   # reduction (D) axis last
            in_specs=[pl.BlockSpec((tm, td), lambda i, p, k: (i, k))],
            # During the statistics pass (p == 0) the output block index is
            # pinned to (i, 0); it is first written at (p == 1, k == 0) while
            # still resident, so no uninitialized block is ever written back.
            out_specs=pl.BlockSpec((tm, td), lambda i, p, k: (i, k * p)),
            scratch_shapes=[
                pltpu.VMEM((tm, 1), jnp.float32),   # running row max
                pltpu.VMEM((tm, 1), jnp.float32),   # running row sum
            ],
        ),
        compiler_params=pltpu.CompilerParams(
            dimension_semantics=("parallel", "arbitrary", "arbitrary"),
            vmem_limit_bytes=vmem_limit,
        ),
    )(x2)


# ---------------------------------------------------------------------------
# Public entry point
# ---------------------------------------------------------------------------

def hyper_softmax(x: jax.Array) -> jax.Array:
    """exp(x) / (sum(exp(x), axis=-1, keepdims=True) + 1)."""
    orig_shape = x.shape
    d = orig_shape[-1]
    x2 = x.reshape(-1, d)
    r = x2.shape[0]
    if x2.size == 0:
        return x

    itemsize = x2.dtype.itemsize
    vmem_cap = _vmem_capacity_bytes()
    per_elem = 4 * itemsize + 8          # 4 pipeline buffers + ~2 f32 tiles
    budget = int(0.70 * vmem_cap)

    # Path 1: lane-dense packing for small D (e.g. the D=16 NCHW case).
    if d < 128 and 128 % d == 0 and r % (128 // d) == 0:
        g = 128 // d
        xp = x2.reshape(r // g, 128)
        tm, vmem_limit = _plan_row_tiles(r // g, 128, itemsize, vmem_cap,
                                         f32_temps=4)
        out = _hyper_softmax_packed(xp, d, tm, vmem_limit)
        return out.reshape(orig_shape)

    # Path 2: whole row per block, if even the minimal block fits the budget.
    if min(r, 8) * d * per_elem <= budget:
        tm, vmem_limit = _plan_row_tiles(r, d, itemsize, vmem_cap, f32_temps=2)
        out = _hyper_softmax_rows(x2, tm, vmem_limit)
        return out.reshape(orig_shape)

    # Path 3: rows too wide for VMEM (hits v7x's 64 MiB first) -> split the
    # reduction axis into a two-pass grid with online max/sum statistics.
    tm = r if r <= 8 else min((r // 8) * 8, 256)
    td = max((budget // (per_elem * tm)) // 128 * 128, 128)
    td = min(td, _round_up(d, 128))
    footprint = tm * td * per_elem + 2 * _MIB
    vmem_limit = int(min(max(32 * _MIB, footprint), int(0.85 * vmem_cap)))
    out = _hyper_softmax_d_tiled(x2, tm, td, vmem_limit)
    return out.reshape(orig_shape)


# ---------------------------------------------------------------------------
# Reference and self-test
# ---------------------------------------------------------------------------

def _reference(x: jax.Array) -> jax.Array:
    ex = jnp.exp(x.astype(jnp.float32))
    return (ex / (jnp.sum(ex, axis=-1, keepdims=True) + 1.0)).astype(x.dtype)


def _check(name, out, ref, atol=2e-6, rtol=2e-5):
    assert out.shape == ref.shape, (name, out.shape, ref.shape)
    assert jnp.allclose(out, ref, atol=atol, rtol=rtol), \
        f"{name}: mismatch vs reference"


if __name__ == "__main__":
    key = jax.random.PRNGKey(0)
    k1, k2, k3 = jax.random.split(key, 3)

    # 1) Small NCHW-style input (softmax over W = 16): exercises the
    #    lane-dense packed path (8 logical rows per 128-lane row).
    x1 = jax.random.normal(k1, (2, 4, 16, 16), dtype=jnp.float32)
    o1 = jax.block_until_ready(hyper_softmax(x1))
    _check("packed small-D", o1, _reference(x1))

    # 2) Whole-row path with a partial boundary row block (R = 15, tm = 8):
    #    validates that the masked boundary block stays row-independent.
    x2 = jax.random.normal(k2, (3, 5, 160), dtype=jnp.float32)
    o2 = jax.block_until_ready(hyper_softmax(x2))
    _check("whole-D rows", o2, _reference(x2))

    # 3) Reduction-split (D-tiled) path, forced at a small shape (D = 320,
    #    td = 128, partial last D block) so the wide-row path is validated
    #    here too; normally it only triggers for rows too wide for VMEM.
    x3 = 3.0 * jax.random.normal(k3, (16, 320), dtype=jnp.float32)
    o3 = jax.block_until_ready(
        _hyper_softmax_d_tiled(x3.reshape(-1, 320), tm=8, td=128,
                               vmem_limit=32 * _MIB).reshape(x3.shape))
    _check("D-tiled", o3, _reference(x3))

    print("KERNEL_OK")
</pallas_src>

<mosaic_0001>
module attributes {stable_mosaic.version = 11 : i64} {
  func.func @_packed_kernel(%arg0: i32, %arg1: memref<8x128xf32, #tpu.memory_space<vmem>>, %arg2: memref<128x128xf32, #tpu.memory_space<vmem>>, %arg3: memref<8x128xf32, #tpu.memory_space<vmem>>) attributes {dimension_semantics = [#tpu.dimension_semantics<parallel>], iteration_bounds = array<i64: 2>, scalar_prefetch = 0 : i64, scratch_operands = 0 : i64, tpu.core_type = #tpu.core_type<tc>, window_params = [{transform_indices = @transform_0, window_bounds = array<i64: 8, 128>}, {pipeline_mode = #tpu.pipeline_mode<synchronous>, transform_indices = @transform_1, window_bounds = array<i64: 128, 128>}, {transform_indices = @transform_2, window_bounds = array<i64: 8, 128>}]} {
    %c0 = arith.constant 0 : index
    %c0_0 = arith.constant 0 : index
    %0 = vector.load %arg1[%c0, %c0_0] : memref<8x128xf32, #tpu.memory_space<vmem>>, vector<8x128xf32>
    %1 = math.exp %0 : vector<8x128xf32>
    %2 = arith.truncf %1 : vector<8x128xf32> to vector<8x128xbf16>
    %3 = arith.extf %2 : vector<8x128xbf16> to vector<8x128xf32>
    %4 = arith.subf %1, %3 : vector<8x128xf32>
    %c0_1 = arith.constant 0 : index
    %c0_2 = arith.constant 0 : index
    %5 = vector.load %arg2[%c0_1, %c0_2] : memref<128x128xf32, #tpu.memory_space<vmem>>, vector<128x128xf32>
    %cst = arith.constant dense<0.000000e+00> : vector<8x128xf32>
    %6 = tpu.matmul %3, %5, %cst {dimension_numbers = #tpu.dot_dimension_numbers<[1], [0], [0], [1], [0, 0, 1, 1], [], []>} : vector<8x128xf32>, vector<128x128xf32>, vector<8x128xf32> -> vector<8x128xf32>
    %cst_3 = arith.constant dense<0.000000e+00> : vector<8x128xf32>
    %7 = tpu.matmul %4, %5, %cst_3 {dimension_numbers = #tpu.dot_dimension_numbers<[1], [0], [0], [1], [0, 0, 1, 1], [], []>} : vector<8x128xf32>, vector<128x128xf32>, vector<8x128xf32> -> vector<8x128xf32>
    %8 = arith.addf %6, %7 : vector<8x128xf32>
    %cst_4 = arith.constant 1.000000e+00 : f32
    %9 = vector.broadcast %cst_4 : f32 to vector<8x128xf32>
    %10 = arith.addf %8, %9 : vector<8x128xf32>
    %11 = tpu.reciprocal %10 : vector<8x128xf32> -> vector<8x128xf32>
    %12 = arith.mulf %1, %11 : vector<8x128xf32>
    %c0_5 = arith.constant 0 : index
    %c0_6 = arith.constant 0 : index
    %13 = vector.load %arg3[%c0_5, %c0_6] : memref<8x128xf32, #tpu.memory_space<vmem>>, vector<8x128xf32>
    tpu.vector_store %arg3[%c0_5, %c0_6], %12 {strides = array<i32>} : memref<8x128xf32, #tpu.memory_space<vmem>>, vector<8x128xf32>,
    return
  }
  func.func @transform_0(%arg0: i32) -> (i32, i32) {
    %c0_i32 = arith.constant 0 : i32
    %c0_i32_0 = arith.constant 0 : i32
    return %arg0, %c0_i32 : i32, i32
  }
  func.func @transform_1(%arg0: i32) -> (i32, i32) {
    %c0_i32 = arith.constant 0 : i32
    %c0_i32_0 = arith.constant 0 : i32
    %c0_i32_1 = arith.constant 0 : i32
    return %c0_i32, %c0_i32_0 : i32, i32
  }
  func.func @transform_2(%arg0: i32) -> (i32, i32) {
    %c0_i32 = arith.constant 0 : i32
    %c0_i32_0 = arith.constant 0 : i32
    return %arg0, %c0_i32 : i32, i32
  }
}

</mosaic_0001>

<llo_original>
// kernel: tpu_custom_call.1
$region0: #{tpu_custom_call.1}
  #allocation0 [shape = 'u32[]', space=smem, size = 0x4, offset = 0x4, fixed_abs, tag = 'smem constant byte address 0x4 - core index']
  #allocation1 [shape = 'u32[144,128]{1,0:T(1,128)}', space=vmem, size = 0x12000, scoped, tag = 'internal scratch']
  %s0 = inlined_call_operand.hbm [shape: f32[16,128], index: 0, kind: input, shape index: {}]
  %s1 = inlined_call_operand.hbm [shape: f32[128,128], index: 1, kind: input, shape index: {}]
  %s2 = inlined_call_operand.hbm [shape: f32[16,128], index: 2, kind: output, shape index: {}]
  %s3 = sld [smem:[#allocation0]]
  $region49: #{tpu_custom_call.1} parent=0
    _
  %s5 = ssub.s32 1, %s3
  %s6 = scalar_select 0, %s5, %s3
  $region1: #{tpu_custom_call.1} parent=0
    #allocation2 [shape = 'u8[8192]{0}', space=vmem, size = 0x2000, scoped, tag = 'input window, operand 0']
    #allocation3 [shape = 's32[2]{0}', space=sflag, size = 0x8, scoped, tag = 'scoped memory for tpu_custom_call.1']
    #allocation4 [shape = 's32[2]{0}', space=sflag, size = 0x8, scoped, tag = 'scoped memory for tpu_custom_call.1']
    #allocation5 [shape = 'u8[65536]{0}', space=vmem, size = 0x10000, scoped, tag = 'input window, operand 1, single buffered']
    #allocation6 [shape = 's32[1]{0}', space=sflag, size = 0x4, scoped, tag = 'scoped memory for tpu_custom_call.1']
    #allocation7 [shape = 'u8[8192]{0}', space=vmem, size = 0x2000, scoped, tag = 'output window, operand 0']
    %7 = vsyncpa [#allocation3], 0
    %s8 = scalar_lea.sflag [#allocation3], 1
    %9 = vsyncpa %s8, 0
    %10 = vsyncpa [#allocation6], 0
    %11 = vsyncpa [#allocation4], 0
    %s12 = scalar_lea.sflag [#allocation4], 1
    %13 = vsyncpa %s12, 0
    loop: start=0, step=1, limit=4
    $region2: #{tpu_custom_call.1} parent=1 // loop_pre_header
      _
    $region3: #{tpu_custom_call.1} parent=1 // loop_header
      %s15 = sphi 0, %s19
      %p16 = scmp.ge.s32.totalorder %s15, 4
      %s25 = sphi 0, %s27
      %s28 = sphi 0, %s25
      %s29 = sphi 0, %s28
      %s45 = sphi 0, %s29
      %s49 = sphi 0, %s49
      %s51 = sphi 0, %s49
      %s52 = sphi 0, %s51
      %s66 = sphi 0, %s52
      %s72 = sphi 0, %s74
      %s75 = sphi 0, %s72
      %s76 = sphi 0, %s75
      %s92 = sphi 0, %s76
    $region4: #{tpu_custom_call.1} parent=1 // loop_header_branch
      %18 = sbr.rel (%p16) target = $region8
    $region5: #{tpu_custom_call.1} parent=1 // loop_body
      %s20 = ssub.s32 %s15, 1
      %s21 = ssub.s32 %s15, 2
      %s22 = sadd.s32 %s15, 1
      %s23 = ssub.s32 %s15, %s22
      %p24 = scmp.eq.s32.totalorder %s23, 0
      %s26 = sadd.s32 %s25, 1
      %s27 = scalar_select %p24, %s25, %s26
      %p30 = pneg %p24
      %p31 = scmp.eq.s32.totalorder %s15, 1
      %p32 = por %p30, %p31
      %p33 = scmp.ne.s32.totalorder %s25, %s28
      %p34 = scmp.eq.s32.totalorder %s15, 0
      %p35 = por %p33, %p34
      %p36 = scmp.ne.s32.totalorder %s25, %s28
      %p37 = scmp.eq.s32.totalorder %s20, 1
      %p38 = por %p36, %p37
      %p39 = scmp.ne.s32.totalorder %s28, %s29
      %p40 = scmp.eq.s32.totalorder %s20, 0
      %p41 = por %p39, %p40
      %p42 = scmp.ne.s32.totalorder %s28, %s29
      %p43 = scmp.eq.s32.totalorder %s21, 1
      %p44 = por %p42, %p43
      %p46 = scmp.ne.s32.totalorder %s29, %s45
      %p47 = scmp.eq.s32.totalorder %s21, 0
      %p48 = por %p46, %p47
      %s50 = sadd.s32 %s49, 1
      %p53 = scmp.eq.s32.totalorder %s15, 1
      %p54 = scmp.ne.s32.totalorder %s49, %s51
      %p55 = scmp.eq.s32.totalorder %s15, 0
      %p56 = por %p54, %p55
      %p57 = scmp.ne.s32.totalorder %s49, %s51
      %p58 = scmp.eq.s32.totalorder %s20, 1
      %p59 = por %p57, %p58
      %p60 = scmp.ne.s32.totalorder %s51, %s52
      %p61 = scmp.eq.s32.totalorder %s20, 0
      %p62 = por %p60, %p61
      %p63 = scmp.ne.s32.totalorder %s51, %s52
      %p64 = scmp.eq.s32.totalorder %s21, 1
      %p65 = por %p63, %p64
      %p67 = scmp.ne.s32.totalorder %s52, %s66
      %p68 = scmp.eq.s32.totalorder %s21, 0
      %p69 = por %p67, %p68
      %s70 = ssub.s32 %s15, %s22
      %p71 = scmp.eq.s32.totalorder %s70, 0
      %s73 = sadd.s32 %s72, 1
      %s74 = scalar_select %p71, %s72, %s73
      %p77 = pneg %p71
      %p78 = scmp.eq.s32.totalorder %s15, 1
      %p79 = por %p77, %p78
      %p80 = scmp.ne.s32.totalorder %s72, %s75
      %p81 = scmp.eq.s32.totalorder %s15, 0
      %p82 = por %p80, %p81
      %p83 = scmp.ne.s32.totalorder %s72, %s75
      %p84 = scmp.eq.s32.totalorder %s20, 1
      %p85 = por %p83, %p84
      %p86 = scmp.ne.s32.totalorder %s75, %s76
      %p87 = scmp.eq.s32.totalorder %s20, 0
      %p88 = por %p86, %p87
      %p89 = scmp.ne.s32.totalorder %s75, %s76
      %p90 = scmp.eq.s32.totalorder %s21, 1
      %p91 = por %p89, %p90
      %p93 = scmp.ne.s32.totalorder %s76, %s92
      %p94 = scmp.eq.s32.totalorder %s21, 0
      %p95 = por %p93, %p94
      %p96 = scmp.le.s32.totalorder 1, %s15
      %p97 = scmp.lt.s32.totalorder %s15, 3
      %p98 = pnand %p96, %p97
      %p99 = pneg %p98
      // Predicated region
      $region9: #{tpu_custom_call.1} parent=5 // pred_check
        _
      $region10: #{tpu_custom_call.1} parent=5 // pred_check_branch
        %101 = sbr.rel (%p98) target = $region12
      $region11: #{tpu_custom_call.1} parent=5 // pred_region
        %s102 = ssub.s32 %s15, 1
        // Predicated region
        $region13: #{tpu_custom_call.1} parent=11 // pred_check
          %p103 = pneg %p62
        $region14: #{tpu_custom_call.1} parent=11 // pred_check_branch
          %105 = sbr.rel (%p103) target = $region16
        $region15: #{tpu_custom_call.1} parent=11 // pred_region
          %s107 = ssub.s32 2048, 2048
          %108 = vsyncadd [#allocation6], %s107
          %s109 = sshll.u32 [#allocation5], 4
          %s110 = int_to_ptr.vmem [resolvable:$true] %s109
          %115 = dma.hbm_to_vmem [thread:$0]  %s1, 2048, %s110, [#allocation6], 128, 128, 8
        $region16: #{tpu_custom_call.1} parent=11 // pred_fallthru
          _
      $region12: #{tpu_custom_call.1} parent=5 // pred_fallthru
        _
      %p116 = scmp.lt.s32.totalorder %s15, 2
      // Predicated region
      $region17: #{tpu_custom_call.1} parent=5 // pred_check
        %p117 = pneg %p116
      $region18: #{tpu_custom_call.1} parent=5 // pred_check_branch
        %119 = sbr.rel (%p117) target = $region20
      $region19: #{tpu_custom_call.1} parent=5 // pred_region
        // Predicated region
        $region21: #{tpu_custom_call.1} parent=19 // pred_check
          %p120 = pneg %p35
        $region22: #{tpu_custom_call.1} parent=19 // pred_check_branch
          %122 = sbr.rel (%p120) target = $region24
        $region23: #{tpu_custom_call.1} parent=19 // pred_region
          %s123 = sand.u32 %s25, 1
          %s124 = scalar_lea.sflag [#allocation3], %s123
          %s125 = sand.u32 %s25, 1
          %s126 = smul.addr %s125, 8
          %s127 = scalar_lea.vmem [#allocation2], %s126
          %s129 = ssub.s32 128, 128
          %130 = vsyncadd %s124, %s129
          %s131 = smul.addr %s15, 128
          %s132 = scalar_lea.hbm %s0, %s131
          %s134 = sshll.u32 %s127, 4
          %s135 = int_to_ptr.vmem [resolvable:$true] %s134
          %137 = dma.hbm_to_vmem [thread:$0]  %s132, 128, %s135, %s124
        $region24: #{tpu_custom_call.1} parent=19 // pred_fallthru
          _
      $region20: #{tpu_custom_call.1} parent=5 // pred_fallthru
        _
      %p138 = scmp.le.s32.totalorder 1, %s15
      %p139 = scmp.lt.s32.totalorder %s15, 3
      %p140 = pnand %p138, %p139
      %p141 = pneg %p140
      // Predicated region
      $region25: #{tpu_custom_call.1} parent=5 // pred_check
        _
      $region26: #{tpu_custom_call.1} parent=5 // pred_check_branch
        %143 = sbr.rel (%p140) target = $region28
      $region27: #{tpu_custom_call.1} parent=5 // pred_region
        %s144 = ssub.s32 %s15, 1
        %s145 = sand.u32 %s28, 1
        %s146 = scalar_lea.sflag [#allocation3], %s145
        %s147 = sand.u32 %s28, 1
        %s148 = smul.addr %s147, 8
        %s149 = scalar_lea.vmem [#allocation2], %s148
        // Predicated region
        $region29: #{tpu_custom_call.1} parent=27 // pred_check
          %p150 = pneg %p41
        $region30: #{tpu_custom_call.1} parent=27 // pred_check_branch
          %152 = sbr.rel (%p150) target = $region32
        $region31: #{tpu_custom_call.1} parent=27 // pred_region
          %153 = dma.done %s146, 128
        $region32: #{tpu_custom_call.1} parent=27 // pred_fallthru
          _
        // Predicated region
        $region33: #{tpu_custom_call.1} parent=27 // pred_check
          %p154 = pneg %p62
        $region34: #{tpu_custom_call.1} parent=27 // pred_check_branch
          %156 = sbr.rel (%p154) target = $region36
        $region35: #{tpu_custom_call.1} parent=27 // pred_region
          %157 = dma.done [#allocation6], 2048
        $region36: #{tpu_custom_call.1} parent=27 // pred_fallthru
          _
        %s158 = sand.u32 %s28, 1
        %s159 = scalar_lea.sflag [#allocation3], %s158
        %s160 = sand.u32 %s28, 1
        %s161 = smul.addr %s160, 8
        %s162 = scalar_lea.vmem [#allocation2], %s161
        %p163 = pneg %p41
        %p164 = pneg %p38
        %p165 = pneg %p62
        %p166 = pneg %p59
        %p167 = pneg %p88
        %p168 = pneg %p85
        %s169 = sand.u32 %s75, 1
        %s170 = scalar_lea.sflag [#allocation4], %s169
        %s171 = sand.u32 %s75, 1
        %s172 = smul.addr %s171, 8
        %s173 = scalar_lea.vmem [#allocation7], %s172
        %v174 = vld [vmem:[%s149] sm:$0xff]
        %v175 = vmul.f32 %v174, 1.442695
        %v176 = vpow.pop %v175
        %v177 = vpack.c.bf16 %v176, %v176
        %v178 = vunpack.c.l.bf16 %v177
        %v179 = vsub.f32 %v176, %v178
        %v180 = vld [vmem:[#allocation5] sm:$0xff]
        %v181 = vld [vmem:[#allocation5 + $0x8] sm:$0xff]
        %v182 = vld [vmem:[#allocation5 + $0x10] sm:$0xff]
        %v183 = vld [vmem:[#allocation5 + $0x18] sm:$0xff]
        %v184 = vld [vmem:[#allocation5 + $0x20] sm:$0xff]
        %v185 = vld [vmem:[#allocation5 + $0x28] sm:$0xff]
        %v186 = vld [vmem:[#allocation5 + $0x30] sm:$0xff]
        %v187 = vld [vmem:[#allocation5 + $0x38] sm:$0xff]
        %v188 = vld [vmem:[#allocation5 + $0x40] sm:$0xff]
        %v189 = vld [vmem:[#allocation5 + $0x48] sm:$0xff]
        %v190 = vld [vmem:[#allocation5 + $0x50] sm:$0xff]
        %v191 = vld [vmem:[#allocation5 + $0x58] sm:$0xff]
        %v192 = vld [vmem:[#allocation5 + $0x60] sm:$0xff]
        %v193 = vld [vmem:[#allocation5 + $0x68] sm:$0xff]
        %v194 = vld [vmem:[#allocation5 + $0x70] sm:$0xff]
        %v195 = vld [vmem:[#allocation5 + $0x78] sm:$0xff]
        %196 = vmatprep.subr.mxu0 0.0
        %197 = vmatpush1.msra.mxu0 %v180
        %198 = vmatprep.subr.mxu0 0.0
        %199 = vmatpush1.msra.mxu0 %v181
        %200 = vmatprep.subr.mxu0 0.0
        %201 = vmatpush1.msra.mxu0 %v182
        %202 = vmatprep.subr.mxu0 0.0
        %203 = vmatpush1.msra.mxu0 %v183
        %204 = vmatprep.subr.mxu0 0.0
        %205 = vmatpush1.msra.mxu0 %v184
        %206 = vmatprep.subr.mxu0 0.0
        %207 = vmatpush1.msra.mxu0 %v185
        %208 = vmatprep.subr.mxu0 0.0
        %209 = vmatpush1.msra.mxu0 %v186
        %210 = vmatprep.subr.mxu0 0.0
        %211 = vmatpush1.msra.mxu0 %v187
        %212 = vmatprep.subr.mxu0 0.0
        %213 = vmatpush1.msra.mxu0 %v188
        %214 = vmatprep.subr.mxu0 0.0
        %215 = vmatpush1.msra.mxu0 %v189
        %216 = vmatprep.subr.mxu0 0.0
        %217 = vmatpush1.msra.mxu0 %v190
        %218 = vmatprep.subr.mxu0 0.0
        %219 = vmatpush1.msra.mxu0 %v191
        %220 = vmatprep.subr.mxu0 0.0
        %221 = vmatpush1.msra.mxu0 %v192
        %222 = vmatprep.subr.mxu0 0.0
        %223 = vmatpush1.msra.mxu0 %v193
        %224 = vmatprep.subr.mxu0 0.0
        %225 = vmatpush1.msra.mxu0 %v194
        %226 = vmatprep.subr.mxu0 0.0
        %227 = vmatpush1.msra.mxu0 %v195
        %228 = vmatprep.subr.mxu0 0.0
        %229 = vmatpush1.msra.mxu0 0.0
        %230 = vmatprep.subr.mxu0 0.0
        %231 = vmatpush1.msra.mxu0 0.0
        %232 = vmatprep.subr.mxu0 0.0
        %233 = vmatpush1.msra.mxu0 0.0
        %234 = vmatprep.subr.mxu0 0.0
        %235 = vmatpush1.msra.mxu0 0.0
        %236 = vmatprep.subr.mxu0 0.0
        %237 = vmatpush1.msra.mxu0 0.0
        %238 = vmatprep.subr.mxu0 0.0
        %239 = vmatpush1.msra.mxu0 0.0
        %240 = vmatprep.subr.mxu0 0.0
        %241 = vmatpush1.msra.mxu0 0.0
        %242 = vmatprep.subr.mxu0 0.0
        %243 = vmatpush1.msra.mxu0 0.0
        %244 = vmatprep.subr.mxu0 0.0
        %245 = vmatpush1.msra.mxu0 0.0
        %246 = vmatprep.subr.mxu0 0.0
        %247 = vmatpush1.msra.mxu0 0.0
        %248 = vmatprep.subr.mxu0 0.0
        %249 = vmatpush1.msra.mxu0 0.0
        %250 = vmatprep.subr.mxu0 0.0
        %251 = vmatpush1.msra.mxu0 0.0
        %252 = vmatprep.subr.mxu0 0.0
        %253 = vmatpush1.msra.mxu0 0.0
        %254 = vmatprep.subr.mxu0 0.0
        %255 = vmatpush1.msra.mxu0 0.0
        %256 = vmatprep.subr.mxu0 0.0
        %257 = vmatpush1.msra.mxu0 0.0
        %258 = vmatprep.subr.mxu0 0.0
        %259 = vmatpush1.msra.mxu0 0.0
        %260 = vmatprep.mubr.f32.mxu0 0.0
        %261 = vmatmul.mubr.f32.gmra.mrb[0].mxu0 %v179
        %v262 = vpop.f32.mrb[0].mxu0
        %v263 = vadd.f32 0.0, %v262
        %v264 = vpop.f32.mrb[0].mxu0
        %265 = vdwg.mxu0
        %266 = vmatprep.subr.mxu0 0.0
        %267 = vmatpush1.msra.mxu0 %v180
        %268 = vmatprep.subr.mxu0 0.0
        %269 = vmatpush1.msra.mxu0 %v181
        %270 = vmatprep.subr.mxu0 0.0
        %271 = vmatpush1.msra.mxu0 %v182
        %272 = vmatprep.subr.mxu0 0.0
        %273 = vmatpush1.msra.mxu0 %v183
        %274 = vmatprep.subr.mxu0 0.0
        %275 = vmatpush1.msra.mxu0 %v184
        %276 = vmatprep.subr.mxu0 0.0
        %277 = vmatpush1.msra.mxu0 %v185
        %278 = vmatprep.subr.mxu0 0.0
        %279 = vmatpush1.msra.mxu0 %v186
        %280 = vmatprep.subr.mxu0 0.0
        %281 = vmatpush1.msra.mxu0 %v187
        %282 = vmatprep.subr.mxu0 0.0
        %283 = vmatpush1.msra.mxu0 %v188
        %284 = vmatprep.subr.mxu0 0.0
        %285 = vmatpush1.msra.mxu0 %v189
        %286 = vmatprep.subr.mxu0 0.0
        %287 = vmatpush1.msra.mxu0 %v190
        %288 = vmatprep.subr.mxu0 0.0
        %289 = vmatpush1.msra.mxu0 %v191
        %290 = vmatprep.subr.mxu0 0.0
        %291 = vmatpush1.msra.mxu0 %v192
        %292 = vmatprep.subr.mxu0 0.0
        %293 = vmatpush1.msra.mxu0 %v193
        %294 = vmatprep.subr.mxu0 0.0
        %295 = vmatpush1.msra.mxu0 %v194
        %296 = vmatprep.subr.mxu0 0.0
        %297 = vmatpush1.msra.mxu0 %v195
        %298 = vmatprep.subr.mxu0 0.0
        %299 = vmatpush1.msra.mxu0 0.0
        %300 = vmatprep.subr.mxu0 0.0
        %301 = vmatpush1.msra.mxu0 0.0
        %302 = vmatprep.subr.mxu0 0.0
        %303 = vmatpush1.msra.mxu0 0.0
        %304 = vmatprep.subr.mxu0 0.0
        %305 = vmatpush1.msra.mxu0 0.0
        %306 = vmatprep.subr.mxu0 0.0
        %307 = vmatpush1.msra.mxu0 0.0
        %308 = vmatprep.subr.mxu0 0.0
        %309 = vmatpush1.msra.mxu0 0.0
        %310 = vmatprep.subr.mxu0 0.0
        %311 = vmatpush1.msra.mxu0 0.0
        %312 = vmatprep.subr.mxu0 0.0
        %313 = vmatpush1.msra.mxu0 0.0
        %314 = vmatprep.subr.mxu0 0.0
        %315 = vmatpush1.msra.mxu0 0.0
        %316 = vmatprep.subr.mxu0 0.0
        %317 = vmatpush1.msra.mxu0 0.0
        %318 = vmatprep.subr.mxu0 0.0
        %319 = vmatpush1.msra.mxu0 0.0
        %320 = vmatprep.subr.mxu0 0.0
        %321 = vmatpush1.msra.mxu0 0.0
        %322 = vmatprep.subr.mxu0 0.0
        %323 = vmatpush1.msra.mxu0 0.0
        %324 = vmatprep.subr.mxu0 0.0
        %325 = vmatpush1.msra.mxu0 0.0
        %326 = vmatprep.subr.mxu0 0.0
        %327 = vmatpush1.msra.mxu0 0.0
        %328 = vmatprep.subr.mxu0 0.0
        %329 = vmatpush1.msra.mxu0 0.0
        %330 = vmatprep.mubr.f32.mxu0 0.0
        %331 = vmatmul.mubr.f32.gmra.mrb[0].mxu0 %v178
        %v332 = vpop.f32.mrb[0].mxu0
        %v333 = vadd.f32 %v263, %v332
        %v334 = vpop.f32.mrb[0].mxu0
        %335 = vdwg.mxu0
        %v336 = vadd.f32 %v333, 1.0
        %v337 = vrcp.pop %v336
        %v338 = vmul.f32 %v176, %v337
        %339 = vst [vmem:[%s173] sm:$0xff] %v338
        %s340 = sand.u32 %s75, 1
        %s341 = scalar_lea.sflag [#allocation4], %s340
        %s342 = sand.u32 %s75, 1
        %s343 = smul.addr %s342, 8
        %s344 = scalar_lea.vmem [#allocation7], %s343
        // Predicated region
        $region37: #{tpu_custom_call.1} parent=27 // pred_check
          %p345 = pneg %p85
        $region38: #{tpu_custom_call.1} parent=27 // pred_check_branch
          %347 = sbr.rel (%p345) target = $region40
        $region39: #{tpu_custom_call.1} parent=27 // pred_region
          %s349 = ssub.s32 128, 128
          %350 = vsyncadd %s341, %s349
          %s351 = smul.addr %s20, 128
          %s352 = scalar_lea.hbm %s2, %s351
          %s354 = sshll.u32 %s344, 4
          %s355 = int_to_ptr.vmem [resolvable:$true] %s354
          %357 = dma.vmem_to_hbm [thread:$0]  %s355, 128, %s352, %s341
        $region40: #{tpu_custom_call.1} parent=27 // pred_fallthru
          _
      $region28: #{tpu_custom_call.1} parent=5 // pred_fallthru
        _
      %p358 = scmp.le.s32.totalorder 2, %s15
      // Predicated region
      $region41: #{tpu_custom_call.1} parent=5 // pred_check
        %p359 = pneg %p358
      $region42: #{tpu_custom_call.1} parent=5 // pred_check_branch
        %361 = sbr.rel (%p359) target = $region44
      $region43: #{tpu_custom_call.1} parent=5 // pred_region
        %s362 = ssub.s32 %s15, 2
        // Predicated region
        $region45: #{tpu_custom_call.1} parent=43 // pred_check
          %p363 = pneg %p91
        $region46: #{tpu_custom_call.1} parent=43 // pred_check_branch
          %365 = sbr.rel (%p363) target = $region48
        $region47: #{tpu_custom_call.1} parent=43 // pred_region
          %s366 = sand.u32 %s76, 1
          %s367 = scalar_lea.sflag [#allocation4], %s366
          %s368 = sand.u32 %s76, 1
          %s369 = smul.addr %s368, 8
          %s370 = scalar_lea.vmem [#allocation7], %s369
          %371 = dma.done %s367, 128
        $region48: #{tpu_custom_call.1} parent=43 // pred_fallthru
          _
      $region44: #{tpu_custom_call.1} parent=5 // pred_fallthru
        _
    $region6: #{tpu_custom_call.1} parent=1 // loop_footer
      %s19 = sadd.s32 1, %s15
    $region7: #{tpu_custom_call.1} parent=1 // loop_footer_branch
      %14 = sbr.rel target = $region3
    $region8: #{tpu_custom_call.1} parent=1 // loop_exit
      _
    %372 = vsyncpa [#allocation3], 1
    %s373 = scalar_lea.sflag [#allocation3], 1
    %374 = vsyncpa %s373, 1
    %375 = vsyncpa [#allocation6], 1
    %376 = vsyncpa [#allocation4], 1
    %s377 = scalar_lea.sflag [#allocation4], 1
    %378 = vsyncpa %s377, 1

</llo_original>
